<compile_context>
chip_gen: v7x
topology: tpu7x:2x2x1
jax: 0.10.0
libtpu: 0.0.40
codegen_flags: <defaults>
</compile_context>

<pallas_src>
import jax
import jax.numpy as jnp
from jax.experimental import pallas as pl
from jax.experimental.pallas import tpu as pltpu


def _tag_loss3_kernel(t0_ref, t1_ref, t2_ref, m_ref, out_ref):
    # All inputs are [B, K]; upcast once, in-kernel.  Keep arithmetic in f32 on
    # every generation (v5e's VPU/EUP have no bf16 path; f32 accumulation).
    t0 = t0_ref[...].astype(jnp.float32)
    t1 = t1_ref[...].astype(jnp.float32)
    t2 = t2_ref[...].astype(jnp.float32)
    m = m_ref[...].astype(jnp.float32)                 # 0/1 mask

    num = jnp.sum(m, axis=1, keepdims=True)            # [B, 1]
    # Exact reciprocals on the tiny [B, 1] operands (B divides total).
    inv_num = 1.0 / (num + 1e-4)                       # [B, 1]
    num2 = (num - 1.0) * num                           # [B, 1]
    inv_num2 = 1.0 / (num2 + 1e-4)                     # [B, 1]

    tag_mean = (t0 + t1 + t2) * (1.0 / 3.0)            # [B, K]

    # ---- pull ---------------------------------------------------------------
    # sum_b [ sum_k (sum_i (t_i - mean)^2)_k * m_k ] / (num_b + eps)
    sq = ((t0 - tag_mean) ** 2
          + (t1 - tag_mean) ** 2
          + (t2 - tag_mean) ** 2)                      # [B, K]
    pull = jnp.sum(jnp.sum(sq * m, axis=1, keepdims=True) * inv_num)

    # ---- push ---------------------------------------------------------------
    # Hoisted form (see header): only sub/abs/max + one masked multiply touch
    # the [B, K, K] tensor; the divide and "-1/num" are applied per batch.
    # TODO(synk): at K ~ 128+ the masked row-sum can become an MXU mat-vec
    # (einsum('bk,bkj->bj', m, fD)) to offload the XLU lane reduce.
    # TODO(synk): for B >= 4 restructure this block as a lax.fori_loop over B
    # so only ~2-3 [K, K] tiles stay live in the 64-vreg file.
    fD = jnp.maximum(
        1.0 - jnp.abs(tag_mean[:, :, None] - tag_mean[:, None, :]), 0.0)  # [B,K,K]
    row = jnp.sum(fD * m[:, None, :], axis=2)          # [B, K]
    s = jnp.sum(row * m, axis=1, keepdims=True)        # [B, 1]  == S_b
    push = jnp.sum(inv_num2 * (s - num * num * inv_num))

    out_ref[0] = pull
    out_ref[1] = push


def _gather_feat(feat, ind):
    # Channel-major gather (no full NCHW -> NHWC transpose in HBM):
    # feat [B, C, H, W] -> [B, C, H*W]; gather spatial positions with ind [B, K].
    b, c = feat.shape[0], feat.shape[1]
    flat = feat.reshape(b, c, -1)
    return jnp.take_along_axis(flat, ind[:, None, :], axis=2)   # [B, C, K]


@jax.jit
def tag_loss_3(tag1, tag2, tag3, ind1, ind2, ind3, mask):
    # TODO(synk): the ind-gather stays in plain JAX; an in-kernel gather would
    # need scalar-prefetch Element gathers and is not the reduction hot path.
    t0 = _gather_feat(tag1, ind1)[:, 0, :]            # [B, K]  (C == 1 squeeze)
    t1 = _gather_feat(tag2, ind2)[:, 0, :]
    t2 = _gather_feat(tag3, ind3)[:, 0, :]
    m = mask.astype(jnp.float32)                      # accepts bool or 0/1 float

    b, k = t0.shape
    cost = pl.CostEstimate(
        flops=5 * b * k * k + 24 * b * k,             # push K^2 work + pull/means
        transcendentals=0,
        bytes_accessed=4 * b * k * 4 + 8,
    )

    vmem = pltpu.MemorySpace.VMEM
    out = pl.pallas_call(
        _tag_loss3_kernel,
        out_shape=jax.ShapeDtypeStruct((2,), jnp.float32),
        in_specs=[pl.BlockSpec(memory_space=vmem)] * 4,
        out_specs=pl.BlockSpec(memory_space=pltpu.MemorySpace.SMEM),
        cost_estimate=cost,
    )(t0, t1, t2, m)
    return out[0], out[1]                             # (pull, push)


def _tag_loss3_ref(tag1, tag2, tag3, ind1, ind2, ind3, mask):
    # Pure-JAX reference mirroring the PyTorch _ae_loss_3 (un-hoisted math).
    t0 = _gather_feat(tag1, ind1)[:, 0, :].astype(jnp.float32)
    t1 = _gather_feat(tag2, ind2)[:, 0, :].astype(jnp.float32)
    t2 = _gather_feat(tag3, ind3)[:, 0, :].astype(jnp.float32)
    m = mask.astype(jnp.float32)

    num = jnp.sum(m, axis=1, keepdims=True)                      # [B, 1]
    tm = (t0 + t1 + t2) / 3.0
    sq = (t0 - tm) ** 2 + (t1 - tm) ** 2 + (t2 - tm) ** 2
    pull = jnp.sum(sq / (num + 1e-4) * m)

    dist = tm[:, :, None] - tm[:, None, :]
    dist = jnp.maximum(1.0 - jnp.abs(dist), 0.0)
    dist = dist - 1.0 / (num[:, :, None] + 1e-4)
    num2 = (num - 1.0) * num
    dist = dist / (num2[:, :, None] + 1e-4)
    pm = m[:, :, None] * m[:, None, :]
    push = jnp.sum(dist * pm)
    return pull, push


if __name__ == "__main__":
    B, C, H, W, K = 2, 1, 16, 16, 8
    key = jax.random.PRNGKey(0)
    k1, k2, k3, k4, k5, k6, k7 = jax.random.split(key, 7)

    tag1 = jax.random.normal(k1, (B, C, H, W), dtype=jnp.float32)
    tag2 = jax.random.normal(k2, (B, C, H, W), dtype=jnp.float32)
    tag3 = jax.random.normal(k3, (B, C, H, W), dtype=jnp.float32)
    ind1 = jax.random.randint(k4, (B, K), 0, H * W, dtype=jnp.int32)
    ind2 = jax.random.randint(k5, (B, K), 0, H * W, dtype=jnp.int32)
    ind3 = jax.random.randint(k6, (B, K), 0, H * W, dtype=jnp.int32)
    mask = jax.random.bernoulli(k7, 0.7, (B, K)).astype(jnp.float32)

    pull, push = tag_loss_3(tag1, tag2, tag3, ind1, ind2, ind3, mask)
    jax.block_until_ready((pull, push))

    pull_ref, push_ref = _tag_loss3_ref(tag1, tag2, tag3, ind1, ind2, ind3, mask)
    assert jnp.allclose(pull, pull_ref, atol=1e-4, rtol=1e-4), (pull, pull_ref)
    assert jnp.allclose(push, push_ref, atol=1e-4, rtol=1e-4), (push, push_ref)

    print("KERNEL_OK")
</pallas_src>

<mosaic_0001>
module attributes {stable_mosaic.version = 11 : i64} {
  func.func @_tag_loss3_kernel(%arg0: memref<2x8xf32, #tpu.memory_space<vmem>>, %arg1: memref<2x8xf32, #tpu.memory_space<vmem>>, %arg2: memref<2x8xf32, #tpu.memory_space<vmem>>, %arg3: memref<2x8xf32, #tpu.memory_space<vmem>>, %arg4: memref<2xf32, #tpu.memory_space<smem>>) attributes {dimension_semantics = [], scalar_prefetch = 0 : i64, scratch_operands = 0 : i64, tpu.core_type = #tpu.core_type<tc>} {
    %c0 = arith.constant 0 : index
    %c0_0 = arith.constant 0 : index
    %0 = vector.load %arg0[%c0, %c0_0] : memref<2x8xf32, #tpu.memory_space<vmem>>, vector<2x8xf32>
    %c0_1 = arith.constant 0 : index
    %c0_2 = arith.constant 0 : index
    %1 = vector.load %arg1[%c0_1, %c0_2] : memref<2x8xf32, #tpu.memory_space<vmem>>, vector<2x8xf32>
    %c0_3 = arith.constant 0 : index
    %c0_4 = arith.constant 0 : index
    %2 = vector.load %arg2[%c0_3, %c0_4] : memref<2x8xf32, #tpu.memory_space<vmem>>, vector<2x8xf32>
    %c0_5 = arith.constant 0 : index
    %c0_6 = arith.constant 0 : index
    %3 = vector.load %arg3[%c0_5, %c0_6] : memref<2x8xf32, #tpu.memory_space<vmem>>, vector<2x8xf32>
    %cst = arith.constant dense<0.000000e+00> : vector<2xf32>
    %4 = vector.multi_reduction <add>, %3, %cst [1] : vector<2x8xf32> to vector<2xf32>
    %5 = vector.shape_cast %4 : vector<2xf32> to vector<2x1xf32>
    %cst_7 = arith.constant 9.99999974E-5 : f32
    %6 = vector.broadcast %cst_7 : f32 to vector<2x1xf32>
    %7 = arith.addf %5, %6 : vector<2x1xf32>
    %cst_8 = arith.constant 1.000000e+00 : f32
    %8 = vector.broadcast %cst_8 : f32 to vector<2x1xf32>
    %9 = arith.divf %8, %7 : vector<2x1xf32>
    %cst_9 = arith.constant 1.000000e+00 : f32
    %10 = vector.broadcast %cst_9 : f32 to vector<2x1xf32>
    %11 = arith.subf %5, %10 : vector<2x1xf32>
    %12 = arith.mulf %11, %5 : vector<2x1xf32>
    %cst_10 = arith.constant 9.99999974E-5 : f32
    %13 = vector.broadcast %cst_10 : f32 to vector<2x1xf32>
    %14 = arith.addf %12, %13 : vector<2x1xf32>
    %cst_11 = arith.constant 1.000000e+00 : f32
    %15 = vector.broadcast %cst_11 : f32 to vector<2x1xf32>
    %16 = arith.divf %15, %14 : vector<2x1xf32>
    %17 = arith.addf %0, %1 : vector<2x8xf32>
    %18 = arith.addf %17, %2 : vector<2x8xf32>
    %cst_12 = arith.constant 0.333333343 : f32
    %19 = vector.broadcast %cst_12 : f32 to vector<2x8xf32>
    %20 = arith.mulf %18, %19 : vector<2x8xf32>
    %21 = arith.subf %0, %20 : vector<2x8xf32>
    %22 = arith.mulf %21, %21 : vector<2x8xf32>
    %23 = arith.subf %1, %20 : vector<2x8xf32>
    %24 = arith.mulf %23, %23 : vector<2x8xf32>
    %25 = arith.addf %22, %24 : vector<2x8xf32>
    %26 = arith.subf %2, %20 : vector<2x8xf32>
    %27 = arith.mulf %26, %26 : vector<2x8xf32>
    %28 = arith.addf %25, %27 : vector<2x8xf32>
    %29 = arith.mulf %28, %3 : vector<2x8xf32>
    %cst_13 = arith.constant dense<0.000000e+00> : vector<2xf32>
    %30 = vector.multi_reduction <add>, %29, %cst_13 [1] : vector<2x8xf32> to vector<2xf32>
    %31 = vector.shape_cast %30 : vector<2xf32> to vector<2x1xf32>
    %32 = arith.mulf %31, %9 : vector<2x1xf32>
    %33 = vector.shape_cast %32 : vector<2x1xf32> to vector<1x2x1xf32>
    %cst_14 = arith.constant dense<0.000000e+00> : vector<1xf32>
    %34 = vector.multi_reduction <add>, %33, %cst_14 [1, 2] : vector<1x2x1xf32> to vector<1xf32>
    %35 = vector.shape_cast %34 : vector<1xf32> to vector<1x1x1xf32>
    %36 = vector.extract %35[0, 0, 0] : f32 from vector<1x1x1xf32>
    %37 = vector.shape_cast %20 : vector<2x8xf32> to vector<2x8x1xf32>
    %38 = vector.shape_cast %20 : vector<2x8xf32> to vector<2x1x8xf32>
    %39 = vector.broadcast %37 : vector<2x8x1xf32> to vector<2x8x8xf32>
    %40 = vector.broadcast %38 : vector<2x1x8xf32> to vector<2x8x8xf32>
    %41 = arith.subf %39, %40 : vector<2x8x8xf32>
    %42 = math.absf %41 : vector<2x8x8xf32>
    %cst_15 = arith.constant 1.000000e+00 : f32
    %43 = vector.broadcast %cst_15 : f32 to vector<2x8x8xf32>
    %44 = arith.subf %43, %42 : vector<2x8x8xf32>
    %cst_16 = arith.constant 0.000000e+00 : f32
    %45 = vector.broadcast %cst_16 : f32 to vector<2x8x8xf32>
    %46 = arith.maximumf %44, %45 : vector<2x8x8xf32>
    %47 = vector.shape_cast %3 : vector<2x8xf32> to vector<2x1x8xf32>
    %48 = vector.broadcast %47 : vector<2x1x8xf32> to vector<2x8x8xf32>
    %49 = arith.mulf %46, %48 : vector<2x8x8xf32>
    %cst_17 = arith.constant dense<0.000000e+00> : vector<2x8xf32>
    %50 = vector.multi_reduction <add>, %49, %cst_17 [2] : vector<2x8x8xf32> to vector<2x8xf32>
    %51 = arith.mulf %50, %3 : vector<2x8xf32>
    %cst_18 = arith.constant dense<0.000000e+00> : vector<2xf32>
    %52 = vector.multi_reduction <add>, %51, %cst_18 [1] : vector<2x8xf32> to vector<2xf32>
    %53 = vector.shape_cast %52 : vector<2xf32> to vector<2x1xf32>
    %54 = arith.mulf %5, %5 : vector<2x1xf32>
    %55 = arith.mulf %54, %9 : vector<2x1xf32>
    %56 = arith.subf %53, %55 : vector<2x1xf32>
    %57 = arith.mulf %16, %56 : vector<2x1xf32>
    %58 = vector.shape_cast %57 : vector<2x1xf32> to vector<1x2x1xf32>
    %cst_19 = arith.constant dense<0.000000e+00> : vector<1xf32>
    %59 = vector.multi_reduction <add>, %58, %cst_19 [1, 2] : vector<1x2x1xf32> to vector<1xf32>
    %60 = vector.shape_cast %59 : vector<1xf32> to vector<1x1x1xf32>
    %61 = vector.extract %60[0, 0, 0] : f32 from vector<1x1x1xf32>
    %c0_20 = arith.constant 0 : index
    %62 = memref.load %arg4[%c0_20] : memref<2xf32, #tpu.memory_space<smem>>
    memref.store %36, %arg4[%c0_20] : memref<2xf32, #tpu.memory_space<smem>>
    %c1 = arith.constant 1 : index
    %63 = memref.load %arg4[%c1] : memref<2xf32, #tpu.memory_space<smem>>
    memref.store %61, %arg4[%c1] : memref<2xf32, #tpu.memory_space<smem>>
    return
  }
}

</mosaic_0001>

<llo_original>
// kernel: tag_loss_3.1
$region0: #{tag_loss_3.1}
  #allocation0 [shape = 'u32[]', space=smem, size = 0x4, offset = 0x4, fixed_abs, tag = 'smem constant byte address 0x4 - core index']
  #allocation1 [shape = 'u32[144,128]{1,0:T(1,128)}', space=vmem, size = 0x12000, scoped, tag = 'internal scratch']
  %s0 = inlined_call_operand.vmem [shape: f32[2,8], index: 0, kind: input, shape index: {}]
  %s1 = inlined_call_operand.vmem [shape: f32[2,8], index: 1, kind: input, shape index: {}]
  %s2 = inlined_call_operand.vmem [shape: f32[2,8], index: 2, kind: input, shape index: {}]
  %s3 = inlined_call_operand.vmem [shape: f32[2,8], index: 3, kind: input, shape index: {}]
  %s4 = inlined_call_operand.vmem [shape: f32[2], index: 4, kind: output, shape index: {}]
  %s5 = sld [smem:[#allocation0]]
  $region26: #{tag_loss_3.1} parent=0
    _
  %s7 = ssub.s32 1, %s5
  %s8 = scalar_select 0, %s7, %s5
  $region1: #{tag_loss_3.1} parent=0
    #allocation2 [shape = 'u8[512]{0}', space=smem, size = 0x200, scoped, tag = 'output window, operand 0, single buffered']
    #allocation3 [shape = 's32[1]{0}', space=sflag, size = 0x4, scoped, tag = 'scoped memory for tag_loss_3.1']
    %9 = vsyncpa [#allocation3], 0
    // Predicated region
    $region2: #{tag_loss_3.1} parent=1 // pred_check
      _
    $region3: #{tag_loss_3.1} parent=1 // pred_check_branch
      %11 = sbr.rel (0) target = $region5
    $region4: #{tag_loss_3.1} parent=1 // pred_region
      _
    $region5: #{tag_loss_3.1} parent=1 // pred_fallthru
      _
    // Predicated region
    $region6: #{tag_loss_3.1} parent=1 // pred_check
      _
    $region7: #{tag_loss_3.1} parent=1 // pred_check_branch
      %13 = sbr.rel (0) target = $region9
    $region8: #{tag_loss_3.1} parent=1 // pred_region
      _
    $region9: #{tag_loss_3.1} parent=1 // pred_fallthru
      _
    // Predicated region
    $region10: #{tag_loss_3.1} parent=1 // pred_check
      _
    $region11: #{tag_loss_3.1} parent=1 // pred_check_branch
      %15 = sbr.rel (0) target = $region13
    $region12: #{tag_loss_3.1} parent=1 // pred_region
      _
    $region13: #{tag_loss_3.1} parent=1 // pred_fallthru
      _
    // Predicated region
    $region14: #{tag_loss_3.1} parent=1 // pred_check
      _
    $region15: #{tag_loss_3.1} parent=1 // pred_check_branch
      %17 = sbr.rel (0) target = $region17
    $region16: #{tag_loss_3.1} parent=1 // pred_region
      _
    $region17: #{tag_loss_3.1} parent=1 // pred_fallthru
      _
    %v18 = vld [vmem:[%s0] sm:$0x3]
    %v19 = vld [vmem:[%s1] sm:$0x3]
    %v20 = vld [vmem:[%s2] sm:$0x3]
    %v21 = vld [vmem:[%s3] sm:$0x3]
    %vm22 = vcmask 58368
    %v23 = vsel %vm22, %v21, 0.0
    %24 = vadd.xlane.f32.xlu0 %v23
    %v25 = vpop.xlane.xlu0 %24
    %v26 = vadd.f32 %v25, 0.0001
    %v27 = vrcp.pop %v26
    %v28 = vmul.f32 1.0, %v27
    %v29 = vsub.f32 %v25, 1.0
    %v30 = vmul.f32 %v29, %v25
    %v31 = vadd.f32 %v30, 0.0001
    %v32 = vrcp.pop %v31
    %v33 = vmul.f32 1.0, %v32
    %v34 = vadd.f32 %v18, %v19
    %v35 = vadd.f32 %v34, %v20
    %v36 = vmul.f32 %v35, 0.33333334
    %v37 = vsub.f32 %v18, %v36
    %v38 = vmul.f32 %v37, %v37
    %v39 = vsub.f32 %v19, %v36
    %v40 = vmul.f32 %v39, %v39
    %v41 = vadd.f32 %v38, %v40
    %v42 = vsub.f32 %v20, %v36
    %v43 = vmul.f32 %v42, %v42
    %v44 = vadd.f32 %v41, %v43
    %v45 = vmul.f32 %v44, %v21
    %v46 = vsel %vm22, %v45, 0.0
    %47 = vadd.xlane.f32.xlu0 %v46
    %v48 = vpop.xlane.xlu0 %47
    %v49 = vmul.f32 %v48, %v28
    %vm50 = vcmask 1024
    %v51 = vsel %vm50, %v49, 0.0
    %52 = vadd.xlane.f32.xlu0 %v51
    %v53 = vpop.xlane.xlu0 %52
    %v54 = vrot.slane %v53, 4
    %v55 = vadd.f32 %v53, %v54
    %v56 = vrot.slane %v55, 2
    %v57 = vadd.f32 %v55, %v56
    %v58 = vrot.slane %v57, 1
    %v59 = vadd.f32 %v57, %v58
    %s60 = vtos %v59
    %v61 = vlaneseq
    %v62 = vshrl.u32 %v61, 7
    %v63 = vsub.s32 0, %v62
    %v64 = vrot.slane %v36, %v63
    %66 = vbcast.lane.b32.xlu0 %v64, 256
    %v67 = vpop.permute.xlu0 %66
    %v68 = vlaneseq
    %v69 = vshrl.u32 %v68, 7
    %v70 = vsub.s32 1, %v69
    %v71 = vrot.slane %v36, %v70
    %73 = vbcast.lane.b32.xlu0 %v71, 256
    %v74 = vpop.permute.xlu0 %73
    %v77 = vunpack.c.l.s4 1966171168
    %v78 = vunpack.c.0.s8 %v77
    %v79 = vlaneseq
    %v80 = vshrl.u32 %v79, 7
    %v81 = vsub.s32 %v78, %v80
    %v82 = vrot.slane %v36, %v81
    %v83 = vcombine.high %v82, %v82
    %v85 = vunpack.c.l.s4 1966171168
    %v86 = vunpack.c.0.s8 %v85
    %v87 = vlaneseq
    %v88 = vshrl.u32 %v87, 7
    %v89 = vsub.s32 %v86, %v88
    %v90 = vrot.slane %v82, %v89
    %v92 = vunpack.c.l.s4 1966171168
    %v93 = vunpack.c.0.s8 %v92
    %v94 = vlaneseq
    %v95 = vshrl.u32 %v94, 7
    %v96 = vsub.s32 %v93, %v95
    %v97 = vrot.slane %v83, %v96
    %v98 = vlaneseq
    %v99 = vshrl.u32 %v98, 7
    %v100 = vsub.s32 0, %v99
    %v101 = vrot.slane %v90, %v100
    %v102 = vlaneseq
    %v103 = vshrl.u32 %v102, 7
    %v104 = vsub.s32 0, %v103
    %v105 = vrot.slane %v97, %v104
    %v108 = vsub.f32 %v67, %v101
    %v109 = vsub.f32 %v74, %v105
    %v110 = vand.u32 2147483647, %v108
    %v111 = vand.u32 2147483647, %v109
    %v112 = vsub.f32 1.0, %v110
    %v113 = vsub.f32 1.0, %v111
    %v114 = vmax.f32 %v112, 0.0
    %v115 = vmax.f32 %v113, 0.0
    %v118 = vunpack.c.l.s4 1966171168
    %v119 = vunpack.c.0.s8 %v118
    %v120 = vlaneseq
    %v121 = vshrl.u32 %v120, 7
    %v122 = vsub.s32 %v119, %v121
    %v123 = vrot.slane %v21, %v122
    %v124 = vcombine.high %v123, %v123
    %v126 = vunpack.c.l.s4 1966171168
    %v127 = vunpack.c.0.s8 %v126
    %v128 = vlaneseq
    %v129 = vshrl.u32 %v128, 7
    %v130 = vsub.s32 %v127, %v129
    %v131 = vrot.slane %v123, %v130
    %v133 = vunpack.c.l.s4 1966171168
    %v134 = vunpack.c.0.s8 %v133
    %v135 = vlaneseq
    %v136 = vshrl.u32 %v135, 7
    %v137 = vsub.s32 %v134, %v136
    %v138 = vrot.slane %v124, %v137
    %v139 = vlaneseq
    %v140 = vshrl.u32 %v139, 7
    %v141 = vsub.s32 0, %v140
    %v142 = vrot.slane %v131, %v141
    %v143 = vlaneseq
    %v144 = vshrl.u32 %v143, 7
    %v145 = vsub.s32 0, %v144
    %v146 = vrot.slane %v138, %v145
    %v149 = vmul.f32 %v114, %v142
    %v150 = vmul.f32 %v115, %v146
    %vm151 = vcmask 64512
    %v152 = vsel %vm151, %v149, 0.0
    %153 = vadd.xlane.f32.xlu0 %v152
    %v154 = vpop.xlane.xlu0 %153
    %v155 = vsel %vm151, %v150, 0.0
    %156 = vadd.xlane.f32.xlu0 %v155
    %v157 = vpop.xlane.xlu0 %156
    %v158 = vlaneseq
    %v159 = vshrl.u32 %v158, 7
    %v160 = vsub.s32 0, %v159
    %v161 = vrot.slane %v21, %v160
    %163 = vbcast.lane.b32.xlu0 %v161, 256
    %v164 = vpop.permute.xlu0 %163
    %v165 = vlaneseq
    %v166 = vshrl.u32 %v165, 7
    %v167 = vsub.s32 1, %v166
    %v168 = vrot.slane %v21, %v167
    %170 = vbcast.lane.b32.xlu0 %v168, 256
    %v171 = vpop.permute.xlu0 %170
    %v174 = vmul.f32 %v154, %v164
    %v175 = vmul.f32 %v157, %v171
    %178 = vset.pattern.permute.xlu0 0
    %179 = vperm.xlu0 %178, %v174
    %v180 = vpop.permute.xlu0 %179
    %181 = vset.pattern.permute.xlu0 0
    %182 = vperm.xlu0 %181, %v175
    %v183 = vpop.permute.xlu0 %182
    %v184 = vlaneseq
    %v185 = vand.u32 %v184, 127
    %v186 = vlaneseq
    %v187 = vshrl.u32 %v186, 7
    %v188 = vsub.s32 %v185, %v187
    %v189 = vrot.slane %v180, %v188
    %v190 = vlaneseq
    %v191 = vshrl.u32 %v190, 7
    %v192 = vsub.s32 %v185, %v191
    %v193 = vrot.slane %v183, %v192
    %vm194 = vcmask 1041409
    %v195 = vsel %vm194, %v193, %v189
    %v197 = vsel %vm22, %v195, 0.0
    %198 = vadd.xlane.f32.xlu0 %v197
    %v199 = vpop.xlane.xlu0 %198
    %v200 = vmul.f32 %v25, %v25
    %v201 = vmul.f32 %v200, %v28
    %v202 = vsub.f32 %v199, %v201
    %v203 = vmul.f32 %v33, %v202
    %v204 = vsel %vm50, %v203, 0.0
    %205 = vadd.xlane.f32.xlu0 %v204
    %v206 = vpop.xlane.xlu0 %205
    %v207 = vrot.slane %v206, 4
    %v208 = vadd.f32 %v206, %v207
    %v209 = vrot.slane %v208, 2
    %v210 = vadd.f32 %v208, %v209
    %v211 = vrot.slane %v210, 1
    %v212 = vadd.f32 %v210, %v211
    %s213 = vtos %v212
    %s214 = scalar_lea.smem [#allocation2], 0
    %215 = sst [smem:[%s214]] %s60
    %s216 = scalar_lea.smem [#allocation2], 1
    %217 = sst [smem:[%s216]] %s213
    // Predicated region
    $region18: #{tag_loss_3.1} parent=1 // pred_check
      _
    $region19: #{tag_loss_3.1} parent=1 // pred_check_branch
      %219 = sbr.rel (0) target = $region21
    $region20: #{tag_loss_3.1} parent=1 // pred_region
      %s221 = ssub.s32 16, 16
      %222 = vsyncadd [#allocation3], %s221
      %s224 = sshll.u32 %s4, 4
      %s225 = int_to_ptr.vmem [resolvable:$true] %s224
      %227 = dma.smem_to_vmem [#allocation2], 16, %s225, [#allocation3]
    $region21: #{tag_loss_3.1} parent=1 // pred_fallthru
      _
    // Predicated region
    $region22: #{tag_loss_3.1} parent=1 // pred_check
      _
    $region23: #{tag_loss_3.1} parent=1 // pred_check_branch
      %229 = sbr.rel (0) target = $region25
    $region24: #{tag_loss_3.1} parent=1 // pred_region
      %230 = dma.done [#allocation3], 16
    $region25: #{tag_loss_3.1} parent=1 // pred_fallthru
      _
    %231 = sfence
    %232 = vsyncpa [#allocation3], 1

</llo_original>
